<compile_context>
chip_gen: v7x
topology: tpu7x:2x2x1
jax: 0.10.0
libtpu: 0.0.40
codegen_flags: <defaults>
</compile_context>

<pallas_src>
import functools

import jax
import jax.numpy as jnp
from jax import lax
from jax.experimental import pallas as pl
from jax.experimental.pallas import tpu as pltpu


def _round_up(x, m):
    return ((x + m - 1) // m) * m


def _vmem_capacity_bytes():
    try:
        return int(getattr(pltpu.get_tpu_info(), "vmem_capacity_bytes"))
    except Exception:
        return 128 * 1024 * 1024


def _pick_tile_n(n, in_row_bytes, work_row_bytes, vmem_cap):
    """Batch-row tile: multiple of 8, sized so that
         * per-stage DMA amortizes the ~0.35us pipeline overhead
           (~10 MiB/stage on v5e/v6e, ~6 MiB on v7x's smaller VMEM),
         * double-buffered inputs + the f32 in-kernel working set fit well
           inside the scoped-VMEM limit,
         * there are >= ~4 grid steps so v7x can shard across both TCs.
    """
    n8 = _round_up(max(n, 1), 8)
    small_vmem = vmem_cap <= 64 * 1024 * 1024            # v7x: 64 MiB per TC
    stage_budget = (6 if small_vmem else 10) * 1024 * 1024
    vmem_limit = min((vmem_cap * 3) // 4, 100 * 1024 * 1024)
    rows_dma = stage_budget // max(in_row_bytes, 1)
    rows_fit = (vmem_limit * 7 // 10) // max(2 * in_row_bytes + work_row_bytes, 1)
    tile = max(8, (min(rows_dma, rows_fit) // 8) * 8)
    parallel_cap = max(8, _round_up(-(-n // 4), 8))      # aim for >= 4 grid steps
    return int(min(tile, n8, parallel_cap, 4096))


def _soft_ce_kernel(*refs, T, use_hard, n_total, ct):
    if use_hard:
        logits_ref, targets_ref, hard_ref, out_ref = refs
    else:
        logits_ref, targets_ref, out_ref = refs
        hard_ref = None

    tile_n, c = logits_ref.shape
    pid = pl.program_id(0)

    # Rows past the true batch size (padded rows of the last tile).
    row_ids = pid * tile_n + lax.broadcasted_iota(jnp.int32, (tile_n, 1), 0)
    valid = row_ids < n_total
    has_tail = (n_total % tile_n) != 0

    def sanitize(x):
        # Padded tail rows hold uninitialized VMEM; zero them before the exps
        # so no NaN/Inf enters the reductions (the per-row select below still
        # discards their contribution).
        return jnp.where(valid, x, 0.0) if has_tail else x

    inv_T = 1.0 / T

    # ---- soft-target softmax (unnormalized; a single per-row divide later) ----
    tgt = sanitize(targets_ref[...].astype(jnp.float32)) * inv_T      # [tile_n, ct]
    m_t = jnp.max(tgt, axis=-1, keepdims=True)
    e_t = jnp.exp(tgt - m_t)
    z_t = jnp.sum(e_t, axis=-1, keepdims=True)                        # [tile_n, 1]

    if use_hard and ct == c:
        # ct == C: share load, max and subtract between the soft and hard
        # log-softmax (and the exp too when T == 1).
        x_full = sanitize(logits_ref[...].astype(jnp.float32))        # [tile_n, C]
        m = jnp.max(x_full, axis=-1, keepdims=True)
        z = x_full - m
        if T == 1.0:
            log_s = jnp.log(jnp.sum(jnp.exp(z), axis=-1, keepdims=True))
            logp_pred = z - log_s
            lse_full = m + log_s
        else:
            zp = z * inv_T
            logp_pred = zp - jnp.log(jnp.sum(jnp.exp(zp), axis=-1, keepdims=True))
            lse_full = m + jnp.log(jnp.sum(jnp.exp(z), axis=-1, keepdims=True))
    else:
        # Soft path works on the ref slice [:, :ct] directly (no full-width
        # f32 copy held live alongside the hard-path tensors).
        xs = sanitize(logits_ref[:, :ct].astype(jnp.float32)) * inv_T
        m_p = jnp.max(xs, axis=-1, keepdims=True)
        z_p = xs - m_p
        logp_pred = z_p - jnp.log(jnp.sum(jnp.exp(z_p), axis=-1, keepdims=True))
        if use_hard:
            x_full = sanitize(logits_ref[...].astype(jnp.float32))
            m_f = jnp.max(x_full, axis=-1, keepdims=True)
            lse_full = m_f + jnp.log(
                jnp.sum(jnp.exp(x_full - m_f), axis=-1, keepdims=True))

    num = jnp.sum(e_t * logp_pred, axis=-1, keepdims=True)            # [tile_n, 1]
    soft_rows = jnp.where(valid, -num / z_t, 0.0)
    soft_partial = jnp.sum(soft_rows)

    if use_hard:
        # hard CE row = logsumexp(logits_row) - logits_row[label]
        labels = hard_ref[...]                                        # [tile_n,1] i32
        col = lax.broadcasted_iota(jnp.int32, (1, c), 1)              # (1, C) iota
        logit_at_label = jnp.sum(
            jnp.where(col == labels, x_full, 0.0), axis=-1, keepdims=True)
        hard_rows = jnp.where(valid, lse_full - logit_at_label, 0.0)
        hard_partial = jnp.sum(hard_rows)

    # Lane-dense (1, 8, 128) output block: sublane 0 = soft partial,
    # sublane 1 = hard partial (vectorized, unmasked store).
    sub = lax.broadcasted_iota(jnp.int32, (1, 8, 128), 1)
    if use_hard:
        blk = jnp.where(sub == 0, soft_partial,
                        jnp.where(sub == 1, hard_partial, 0.0))
    else:
        blk = jnp.where(sub == 0, soft_partial, 0.0)
    out_ref[...] = blk


def soft_ce_loss(logits, targets, hard_targets=None, *, T=1.0, alpha=1.0,
                 tile_rows=None):
    """Pallas implementation of SoftCELoss.forward.

    logits:       [N, C]   float (f32 or bf16)
    targets:      [N, Ct]  float soft-target logits, Ct <= C
    hard_targets: [N] int class indices or None
    returns scalar float32 loss
    """
    n, c = logits.shape
    ct = targets.shape[1]
    assert ct <= c, "targets must not have more classes than logits"

    T = float(T)
    alpha = float(alpha)
    use_hard = hard_targets is not None and alpha != 0.0

    # Soft-only path: don't stream logits columns that are never read.
    if use_hard:
        lg_w = c
    else:
        ct_pad = _round_up(ct, 128)
        lg_w = c if ct_pad >= c else ct_pad

    it_l = jnp.dtype(logits.dtype).itemsize
    it_t = jnp.dtype(targets.dtype).itemsize
    in_row_bytes = lg_w * it_l + ct * it_t + (4 if use_hard else 0)
    # ~3 live f32 full-width temporaries per processed width.
    work_row_bytes = 12 * (ct + (c if use_hard else 0))

    vmem_cap = _vmem_capacity_bytes()
    vmem_limit = int(min((vmem_cap * 3) // 4, 100 * 1024 * 1024))

    if tile_rows is None:
        tile_n = _pick_tile_n(n, in_row_bytes, work_row_bytes, vmem_cap)
    else:
        tile_n = max(8, _round_up(int(tile_rows), 8))
    num_tiles = pl.cdiv(n, tile_n)

    # TODO(synk): for LLM-vocab-scale C (>= ~32k) on v7x, add a second
    # "arbitrary" grid axis over C with an online max/sum accumulator instead
    # of full-C row blocks.

    in_specs = [
        pl.BlockSpec((tile_n, lg_w), lambda i: (i, 0)),   # logits (single stream)
        pl.BlockSpec((tile_n, ct), lambda i: (i, 0)),     # soft targets
    ]
    args = [logits, targets]
    if use_hard:
        in_specs.append(pl.BlockSpec((tile_n, 1), lambda i: (i, 0)))
        args.append(hard_targets.astype(jnp.int32).reshape(n, 1))

    kernel = functools.partial(
        _soft_ce_kernel, T=T, use_hard=use_hard, n_total=n, ct=ct)

    partials = pl.pallas_call(
        kernel,
        out_shape=jax.ShapeDtypeStruct((num_tiles, 8, 128), jnp.float32),
        grid_spec=pltpu.PrefetchScalarGridSpec(
            num_scalar_prefetch=0,
            grid=(num_tiles,),
            in_specs=in_specs,
            out_specs=pl.BlockSpec((1, 8, 128), lambda i: (i, 0, 0)),
        ),
        compiler_params=pltpu.CompilerParams(
            dimension_semantics=("parallel",),            # tiles shard across TCs
            vmem_limit_bytes=vmem_limit,
        ),
    )(*args)

    # Tiny final reduction + scaling in the wrapper (keeps the grid parallel).
    loss = jnp.sum(partials[:, 0, 0]) * (T * T / n)
    if use_hard:
        loss = loss + alpha * jnp.sum(partials[:, 1, 0]) / n
    return loss


def _reference(logits, targets, hard_targets, T, alpha):
    """Pure-JAX reference mirroring the PyTorch code."""
    ct = targets.shape[1]
    p_target = jax.nn.softmax(targets / T, axis=1)
    logp_pred = jax.nn.log_softmax(logits[:, :ct] / T, axis=1)
    ce = jnp.sum(-p_target * logp_pred, axis=1).mean() * T * T
    if hard_targets is not None and alpha != 0.0:
        logp = jax.nn.log_softmax(logits, axis=1)
        hard_ce = -jnp.take_along_axis(
            logp, hard_targets[:, None].astype(jnp.int32), axis=1)[:, 0].mean()
        ce = ce + alpha * hard_ce
    return ce


if __name__ == "__main__":
    key = jax.random.PRNGKey(0)
    k1, k2, k3, k4, k5, k6, k7, k8 = jax.random.split(key, 8)

    # --- test 1: square case, soft + hard terms, T != 1 ---
    N, C, CT = 8, 32, 32
    T_temp, alpha = 2.0, 1.0
    logits = jax.random.normal(k1, (N, C), dtype=jnp.float32)
    targets = jax.random.normal(k2, (N, CT), dtype=jnp.float32)
    hard_targets = jax.random.randint(k3, (N,), 0, C, dtype=jnp.int32)

    loss = jax.block_until_ready(
        soft_ce_loss(logits, targets, hard_targets, T=T_temp, alpha=alpha))
    ref = _reference(logits, targets, hard_targets, T_temp, alpha)
    assert jnp.allclose(loss, ref, atol=1e-5, rtol=1e-5), (loss, ref)

    # T == 1 shared-exp branch (soft + hard, ct == c)
    loss_t1 = jax.block_until_ready(
        soft_ce_loss(logits, targets, hard_targets, T=1.0, alpha=0.7))
    ref_t1 = _reference(logits, targets, hard_targets, 1.0, 0.7)
    assert jnp.allclose(loss_t1, ref_t1, atol=1e-5, rtol=1e-5), (loss_t1, ref_t1)

    # soft-only path (hard inputs are not even passed to the kernel)
    loss_soft = jax.block_until_ready(
        soft_ce_loss(logits, targets, None, T=T_temp, alpha=alpha))
    ref_soft = _reference(logits, targets, None, T_temp, alpha)
    assert jnp.allclose(loss_soft, ref_soft, atol=1e-5, rtol=1e-5), (loss_soft, ref_soft)

    # --- test 2: Ct < C (in-kernel slice) + N not a multiple of 8 (row masking) ---
    N2, C2, CT2 = 20, 64, 32
    T2, a2 = 3.0, 0.5
    logits2 = jax.random.normal(k4, (N2, C2), dtype=jnp.float32)
    targets2 = jax.random.normal(k5, (N2, CT2), dtype=jnp.float32)
    hard2 = jax.random.randint(k6, (N2,), 0, C2, dtype=jnp.int32)

    loss2 = jax.block_until_ready(
        soft_ce_loss(logits2, targets2, hard2, T=T2, alpha=a2))
    ref2 = _reference(logits2, targets2, hard2, T2, a2)
    assert jnp.allclose(loss2, ref2, atol=1e-5, rtol=1e-5), (loss2, ref2)

    # --- test 3: force multiple batch tiles (partial-sum path + padded last tile) ---
    loss3 = jax.block_until_ready(
        soft_ce_loss(logits2, targets2, hard2, T=T2, alpha=a2, tile_rows=8))
    assert jnp.allclose(loss3, ref2, atol=1e-5, rtol=1e-5), (loss3, ref2)

    # --- test 4: soft-only with Ct << C exercises the trimmed logits stream ---
    N3, C3, CT3 = 16, 256, 100
    logits3 = jax.random.normal(k7, (N3, C3), dtype=jnp.float32)
    targets3 = jax.random.normal(k8, (N3, CT3), dtype=jnp.float32)
    loss4 = jax.block_until_ready(
        soft_ce_loss(logits3, targets3, None, T=1.5, alpha=1.0))
    ref4 = _reference(logits3, targets3, None, 1.5, 1.0)
    assert jnp.allclose(loss4, ref4, atol=1e-5, rtol=1e-5), (loss4, ref4)

    print("KERNEL_OK")
</pallas_src>

<mosaic_0001>
module attributes {stable_mosaic.version = 11 : i64} {
  func.func @_soft_ce_kernel(%arg0: i32, %arg1: memref<8x32xf32, #tpu.memory_space<vmem>>, %arg2: memref<8x32xf32, #tpu.memory_space<vmem>>, %arg3: memref<8x1xi32, #tpu.memory_space<vmem>>, %arg4: memref<1x8x128xf32, #tpu.memory_space<vmem>>) attributes {dimension_semantics = [#tpu.dimension_semantics<parallel>], iteration_bounds = array<i64: 1>, scalar_prefetch = 0 : i64, scratch_operands = 0 : i64, tpu.core_type = #tpu.core_type<tc>, window_params = [{transform_indices = @transform_0, window_bounds = array<i64: 8, 32>}, {transform_indices = @transform_1, window_bounds = array<i64: 8, 32>}, {transform_indices = @transform_2, window_bounds = array<i64: 8, 1>}, {transform_indices = @transform_3, window_bounds = array<i64: 1, 8, 128>}]} {
    %c8_i32 = arith.constant 8 : i32
    %0 = arith.muli %arg0, %c8_i32 : i32
    %1 = tpu.iota {dimensions = array<i32: 0>} : vector<8x1xi32>
    %2 = vector.broadcast %0 : i32 to vector<8x1xi32>
    %3 = arith.addi %2, %1 : vector<8x1xi32>
    %c8_i32_0 = arith.constant 8 : i32
    %4 = vector.broadcast %c8_i32_0 : i32 to vector<8x1xi32>
    %5 = arith.cmpi slt, %3, %4 : vector<8x1xi32>
    %c0 = arith.constant 0 : index
    %c0_1 = arith.constant 0 : index
    %6 = vector.load %arg2[%c0, %c0_1] : memref<8x32xf32, #tpu.memory_space<vmem>>, vector<8x32xf32>
    %cst = arith.constant 5.000000e-01 : f32
    %7 = vector.broadcast %cst : f32 to vector<8x32xf32>
    %8 = arith.mulf %6, %7 : vector<8x32xf32>
    %cst_2 = arith.constant dense<0xFF800000> : vector<8xf32>
    %9 = vector.multi_reduction <maximumf>, %8, %cst_2 [1] : vector<8x32xf32> to vector<8xf32>
    %10 = vector.shape_cast %9 : vector<8xf32> to vector<8x1xf32>
    %11 = vector.broadcast %10 : vector<8x1xf32> to vector<8x32xf32>
    %12 = arith.subf %8, %11 : vector<8x32xf32>
    %13 = math.exp %12 : vector<8x32xf32>
    %cst_3 = arith.constant dense<0.000000e+00> : vector<8xf32>
    %14 = vector.multi_reduction <add>, %13, %cst_3 [1] : vector<8x32xf32> to vector<8xf32>
    %15 = vector.shape_cast %14 : vector<8xf32> to vector<8x1xf32>
    %c0_4 = arith.constant 0 : index
    %c0_5 = arith.constant 0 : index
    %16 = vector.load %arg1[%c0_4, %c0_5] : memref<8x32xf32, #tpu.memory_space<vmem>>, vector<8x32xf32>
    %cst_6 = arith.constant dense<0xFF800000> : vector<8xf32>
    %17 = vector.multi_reduction <maximumf>, %16, %cst_6 [1] : vector<8x32xf32> to vector<8xf32>
    %18 = vector.shape_cast %17 : vector<8xf32> to vector<8x1xf32>
    %19 = vector.broadcast %18 : vector<8x1xf32> to vector<8x32xf32>
    %20 = arith.subf %16, %19 : vector<8x32xf32>
    %cst_7 = arith.constant 5.000000e-01 : f32
    %21 = vector.broadcast %cst_7 : f32 to vector<8x32xf32>
    %22 = arith.mulf %20, %21 : vector<8x32xf32>
    %23 = math.exp %22 : vector<8x32xf32>
    %cst_8 = arith.constant dense<0.000000e+00> : vector<8xf32>
    %24 = vector.multi_reduction <add>, %23, %cst_8 [1] : vector<8x32xf32> to vector<8xf32>
    %25 = vector.shape_cast %24 : vector<8xf32> to vector<8x1xf32>
    %26 = math.log %25 : vector<8x1xf32>
    %27 = vector.broadcast %26 : vector<8x1xf32> to vector<8x32xf32>
    %28 = arith.subf %22, %27 : vector<8x32xf32>
    %29 = math.exp %20 : vector<8x32xf32>
    %cst_9 = arith.constant dense<0.000000e+00> : vector<8xf32>
    %30 = vector.multi_reduction <add>, %29, %cst_9 [1] : vector<8x32xf32> to vector<8xf32>
    %31 = vector.shape_cast %30 : vector<8xf32> to vector<8x1xf32>
    %32 = math.log %31 : vector<8x1xf32>
    %33 = arith.addf %18, %32 : vector<8x1xf32>
    %34 = arith.mulf %13, %28 : vector<8x32xf32>
    %cst_10 = arith.constant dense<0.000000e+00> : vector<8xf32>
    %35 = vector.multi_reduction <add>, %34, %cst_10 [1] : vector<8x32xf32> to vector<8xf32>
    %36 = vector.shape_cast %35 : vector<8xf32> to vector<8x1xf32>
    %cst_11 = arith.constant 0.000000e+00 : f32
    %37 = vector.broadcast %cst_11 : f32 to vector<8x1xf32>
    %38 = arith.subf %37, %36 : vector<8x1xf32>
    %39 = arith.divf %38, %15 : vector<8x1xf32>
    %cst_12 = arith.constant 0.000000e+00 : f32
    %40 = vector.broadcast %cst_12 : f32 to vector<8x1xf32>
    %41 = arith.select %5, %39, %40 : vector<8x1xi1>, vector<8x1xf32>
    %42 = vector.shape_cast %41 : vector<8x1xf32> to vector<1x8x1xf32>
    %cst_13 = arith.constant dense<0.000000e+00> : vector<1xf32>
    %43 = vector.multi_reduction <add>, %42, %cst_13 [1, 2] : vector<1x8x1xf32> to vector<1xf32>
    %44 = vector.shape_cast %43 : vector<1xf32> to vector<1x1x1xf32>
    %45 = vector.extract %44[0, 0, 0] : f32 from vector<1x1x1xf32>
    %c0_14 = arith.constant 0 : index
    %c0_15 = arith.constant 0 : index
    %46 = vector.load %arg3[%c0_14, %c0_15] : memref<8x1xi32, #tpu.memory_space<vmem>>, vector<8x1xi32>
    %47 = tpu.iota {dimensions = array<i32: 1>} : vector<1x32xi32>
    %48 = vector.broadcast %47 : vector<1x32xi32> to vector<8x32xi32>
    %49 = vector.broadcast %46 : vector<8x1xi32> to vector<8x32xi32>
    %50 = arith.cmpi eq, %48, %49 : vector<8x32xi32>
    %cst_16 = arith.constant 0.000000e+00 : f32
    %51 = vector.broadcast %cst_16 : f32 to vector<8x32xf32>
    %52 = arith.select %50, %16, %51 : vector<8x32xi1>, vector<8x32xf32>
    %cst_17 = arith.constant dense<0.000000e+00> : vector<8xf32>
    %53 = vector.multi_reduction <add>, %52, %cst_17 [1] : vector<8x32xf32> to vector<8xf32>
    %54 = vector.shape_cast %53 : vector<8xf32> to vector<8x1xf32>
    %55 = arith.subf %33, %54 : vector<8x1xf32>
    %cst_18 = arith.constant 0.000000e+00 : f32
    %56 = vector.broadcast %cst_18 : f32 to vector<8x1xf32>
    %57 = arith.select %5, %55, %56 : vector<8x1xi1>, vector<8x1xf32>
    %58 = vector.shape_cast %57 : vector<8x1xf32> to vector<1x8x1xf32>
    %cst_19 = arith.constant dense<0.000000e+00> : vector<1xf32>
    %59 = vector.multi_reduction <add>, %58, %cst_19 [1, 2] : vector<1x8x1xf32> to vector<1xf32>
    %60 = vector.shape_cast %59 : vector<1xf32> to vector<1x1x1xf32>
    %61 = vector.extract %60[0, 0, 0] : f32 from vector<1x1x1xf32>
    %62 = tpu.iota {dimensions = array<i32: 1>} : vector<1x8x128xi32>
    %c0_i32 = arith.constant 0 : i32
    %63 = vector.broadcast %c0_i32 : i32 to vector<1x8x128xi32>
    %64 = arith.cmpi eq, %62, %63 : vector<1x8x128xi32>
    %c1_i32 = arith.constant 1 : i32
    %65 = vector.broadcast %c1_i32 : i32 to vector<1x8x128xi32>
    %66 = arith.cmpi eq, %62, %65 : vector<1x8x128xi32>
    %cst_20 = arith.constant 0.000000e+00 : f32
    %67 = vector.broadcast %61 : f32 to vector<1x8x128xf32>
    %68 = vector.broadcast %cst_20 : f32 to vector<1x8x128xf32>
    %69 = arith.select %66, %67, %68 : vector<1x8x128xi1>, vector<1x8x128xf32>
    %70 = vector.broadcast %45 : f32 to vector<1x8x128xf32>
    %71 = arith.select %64, %70, %69 : vector<1x8x128xi1>, vector<1x8x128xf32>
    %c0_21 = arith.constant 0 : index
    %c0_22 = arith.constant 0 : index
    %c0_23 = arith.constant 0 : index
    %72 = vector.load %arg4[%c0_21, %c0_22, %c0_23] : memref<1x8x128xf32, #tpu.memory_space<vmem>>, vector<1x8x128xf32>
    tpu.vector_store %arg4[%c0_21, %c0_22, %c0_23], %71 {strides = array<i32>} : memref<1x8x128xf32, #tpu.memory_space<vmem>>, vector<1x8x128xf32>,
    return
  }
  func.func @transform_0(%arg0: i32) -> (i32, i32) {
    %c0_i32 = arith.constant 0 : i32
    %c0_i32_0 = arith.constant 0 : i32
    return %arg0, %c0_i32 : i32, i32
  }
  func.func @transform_1(%arg0: i32) -> (i32, i32) {
    %c0_i32 = arith.constant 0 : i32
    %c0_i32_0 = arith.constant 0 : i32
    return %arg0, %c0_i32 : i32, i32
  }
  func.func @transform_2(%arg0: i32) -> (i32, i32) {
    %c0_i32 = arith.constant 0 : i32
    %c0_i32_0 = arith.constant 0 : i32
    return %arg0, %c0_i32 : i32, i32
  }
  func.func @transform_3(%arg0: i32) -> (i32, i32, i32) {
    %c0_i32 = arith.constant 0 : i32
    %c0_i32_0 = arith.constant 0 : i32
    %c0_i32_1 = arith.constant 0 : i32
    return %arg0, %c0_i32, %c0_i32_0 : i32, i32, i32
  }
}

</mosaic_0001>

<llo_original>
// kernel: tpu_custom_call.1
$region0: #{tpu_custom_call.1}
  #allocation0 [shape = 'u32[]', space=smem, size = 0x4, offset = 0x4, fixed_abs, tag = 'smem constant byte address 0x4 - core index']
  #allocation1 [shape = 'u32[144,128]{1,0:T(1,128)}', space=vmem, size = 0x12000, scoped, tag = 'internal scratch']
  %s0 = inlined_call_operand.hbm [shape: f32[8,32], index: 0, kind: input, shape index: {}]
  %s1 = inlined_call_operand.hbm [shape: f32[8,32], index: 1, kind: input, shape index: {}]
  %s2 = inlined_call_operand.hbm [shape: s32[8,1], index: 2, kind: input, shape index: {}]
  %s3 = inlined_call_operand.hbm [shape: f32[1,8,128], index: 3, kind: output, shape index: {}]
  %s4 = sld [smem:[#allocation0]]
  $region34: #{tpu_custom_call.1} parent=0
    _
  %s6 = ssub.s32 1, %s4
  %s7 = scalar_select 0, %s6, %s4
  $region1: #{tpu_custom_call.1} parent=0
    #allocation2 [shape = 'u8[4096]{0}', space=vmem, size = 0x1000, scoped, tag = 'input window, operand 0, single buffered']
    #allocation3 [shape = 's32[1]{0}', space=sflag, size = 0x4, scoped, tag = 'scoped memory for tpu_custom_call.1']
    #allocation4 [shape = 's32[1]{0}', space=sflag, size = 0x4, scoped, tag = 'scoped memory for tpu_custom_call.1']
    #allocation5 [shape = 'u8[4096]{0}', space=vmem, size = 0x1000, scoped, tag = 'input window, operand 1, single buffered']
    #allocation6 [shape = 's32[1]{0}', space=sflag, size = 0x4, scoped, tag = 'scoped memory for tpu_custom_call.1']
    #allocation7 [shape = 'u8[4096]{0}', space=vmem, size = 0x1000, scoped, tag = 'input window, operand 2, single buffered']
    #allocation8 [shape = 'u8[4096]{0}', space=vmem, size = 0x1000, scoped, tag = 'output window, operand 0, single buffered']
    %8 = vsyncpa [#allocation3], 0
    %9 = vsyncpa [#allocation6], 0
    %10 = vsyncpa [#allocation4], 0
    // Predicated region
    $region2: #{tpu_custom_call.1} parent=1 // pred_check
      _
    $region3: #{tpu_custom_call.1} parent=1 // pred_check_branch
      %12 = sbr.rel (0) target = $region5
    $region4: #{tpu_custom_call.1} parent=1 // pred_region
      %s14 = ssub.s32 128, 128
      %15 = vsyncadd [#allocation3], %s14
      %s17 = sshll.u32 [#allocation2], 4
      %s18 = int_to_ptr.vmem [resolvable:$true] %s17
      %20 = dma.hbm_to_vmem [thread:$0]  %s0, 128, %s18, [#allocation3]
    $region5: #{tpu_custom_call.1} parent=1 // pred_fallthru
      _
    // Predicated region
    $region6: #{tpu_custom_call.1} parent=1 // pred_check
      _
    $region7: #{tpu_custom_call.1} parent=1 // pred_check_branch
      %22 = sbr.rel (0) target = $region9
    $region8: #{tpu_custom_call.1} parent=1 // pred_region
      %s24 = ssub.s32 128, 128
      %25 = vsyncadd [#allocation6], %s24
      %s27 = sshll.u32 [#allocation5], 4
      %s28 = int_to_ptr.vmem [resolvable:$true] %s27
      %30 = dma.hbm_to_vmem [thread:$0]  %s1, 128, %s28, [#allocation6]
    $region9: #{tpu_custom_call.1} parent=1 // pred_fallthru
      _
    // Predicated region
    $region10: #{tpu_custom_call.1} parent=1 // pred_check
      _
    $region11: #{tpu_custom_call.1} parent=1 // pred_check_branch
      %32 = sbr.rel (0) target = $region13
    $region12: #{tpu_custom_call.1} parent=1 // pred_region
      %s34 = ssub.s32 128, 128
      %35 = vsyncadd [#allocation6], %s34
      %s37 = sshll.u32 [#allocation7], 4
      %s38 = int_to_ptr.vmem [resolvable:$true] %s37
      %40 = dma.hbm_to_vmem [thread:$0]  %s2, 128, %s38, [#allocation6]
    $region13: #{tpu_custom_call.1} parent=1 // pred_fallthru
      _
    // Predicated region
    $region14: #{tpu_custom_call.1} parent=1 // pred_check
      _
    $region15: #{tpu_custom_call.1} parent=1 // pred_check_branch
      %42 = sbr.rel (0) target = $region17
    $region16: #{tpu_custom_call.1} parent=1 // pred_region
      %43 = dma.done [#allocation3], 128
    $region17: #{tpu_custom_call.1} parent=1 // pred_fallthru
      _
    // Predicated region
    $region18: #{tpu_custom_call.1} parent=1 // pred_check
      _
    $region19: #{tpu_custom_call.1} parent=1 // pred_check_branch
      %45 = sbr.rel (0) target = $region21
    $region20: #{tpu_custom_call.1} parent=1 // pred_region
      %46 = dma.done [#allocation6], 128
    $region21: #{tpu_custom_call.1} parent=1 // pred_fallthru
      _
    // Predicated region
    $region22: #{tpu_custom_call.1} parent=1 // pred_check
      _
    $region23: #{tpu_custom_call.1} parent=1 // pred_check_branch
      %48 = sbr.rel (0) target = $region25
    $region24: #{tpu_custom_call.1} parent=1 // pred_region
      %49 = dma.done [#allocation6], 128
    $region25: #{tpu_custom_call.1} parent=1 // pred_fallthru
      _
    %s50 = smul.u32 0, 8
    %v51 = vlaneseq
    %v52 = vshrl.u32 %v51, 7
    %v53 = vstv %s50
    %v54 = vadd.s32 %v53, %v52
    %vm55 = vcmp.lt.s32.totalorder %v54, 8
    %v56 = vld [vmem:[#allocation5] sm:$0xff]
    %v57 = vmul.f32 %v56, 0.5
    %vm58 = vcmask 261120
    %v59 = vsel %vm58, %v57, -inf
    %60 = vmax.xlane.f32.xlu0 %v59
    %v61 = vpop.xlane.xlu0 %60
    %v62 = vsub.f32 %v57, %v61
    %v63 = vmul.f32 %v62, 1.442695
    %v64 = vpow.pop %v63
    %v65 = vsel %vm58, %v64, 0.0
    %66 = vadd.xlane.f32.xlu0 %v65
    %v67 = vpop.xlane.xlu0 %66
    %v68 = vld [vmem:[#allocation2] sm:$0xff]
    %v69 = vsel %vm58, %v68, -inf
    %70 = vmax.xlane.f32.xlu0 %v69
    %v71 = vpop.xlane.xlu0 %70
    %v72 = vsub.f32 %v68, %v71
    %v73 = vmul.f32 %v72, 0.5
    %v74 = vmul.f32 %v73, 1.442695
    %v75 = vpow.pop %v74
    %v76 = vsel %vm58, %v75, 0.0
    %77 = vadd.xlane.f32.xlu0 %v76
    %v78 = vpop.xlane.xlu0 %77
    %v79 = vlog2.pop %v78
    %v80 = vmul.f32 %v79, 0.6931472
    %v81 = vsub.f32 %v73, %v80
    %v82 = vmul.f32 %v72, 1.442695
    %v83 = vpow.pop %v82
    %v84 = vsel %vm58, %v83, 0.0
    %85 = vadd.xlane.f32.xlu0 %v84
    %v86 = vpop.xlane.xlu0 %85
    %v87 = vlog2.pop %v86
    %v88 = vmul.f32 %v87, 0.6931472
    %v89 = vadd.f32 %v71, %v88
    %v90 = vmul.f32 %v64, %v81
    %v91 = vsel %vm58, %v90, 0.0
    %92 = vadd.xlane.f32.xlu0 %v91
    %v93 = vpop.xlane.xlu0 %92
    %v94 = vsub.f32 0.0, %v93
    %v95 = vrcp.pop %v67
    %v96 = vmul.f32 %v94, %v95
    %v97 = vsel %vm55, %v96, 0.0
    %vm98 = vcmask 7168
    %v99 = vsel %vm98, %v97, 0.0
    %100 = vadd.xlane.f32.xlu0 %v99
    %v101 = vpop.xlane.xlu0 %100
    %v102 = vrot.slane %v101, 4
    %v103 = vadd.f32 %v101, %v102
    %v104 = vrot.slane %v103, 2
    %v105 = vadd.f32 %v103, %v104
    %v106 = vrot.slane %v105, 1
    %v107 = vadd.f32 %v105, %v106
    %s108 = vtos %v107
    %v109 = vld [vmem:[#allocation7] sm:$0xff]
    %v110 = vlaneseq
    %v111 = vand.u32 %v110, 127
    %112 = vset.pattern.permute.xlu0 0
    %113 = vperm.xlu0 %112, %v109
    %v114 = vpop.permute.xlu0 %113
    %vm115 = vcmp.eq.s32.totalorder %v111, %v114
    %v116 = vsel %vm115, %v68, 0.0
    %v117 = vsel %vm58, %v116, 0.0
    %118 = vadd.xlane.f32.xlu0 %v117
    %v119 = vpop.xlane.xlu0 %118
    %v120 = vsub.f32 %v89, %v119
    %v121 = vsel %vm55, %v120, 0.0
    %v122 = vsel %vm98, %v121, 0.0
    %123 = vadd.xlane.f32.xlu0 %v122
    %v124 = vpop.xlane.xlu0 %123
    %v125 = vrot.slane %v124, 4
    %v126 = vadd.f32 %v124, %v125
    %v127 = vrot.slane %v126, 2
    %v128 = vadd.f32 %v126, %v127
    %v129 = vrot.slane %v128, 1
    %v130 = vadd.f32 %v128, %v129
    %s131 = vtos %v130
    %vm132 = vcmp.eq.s32.totalorder %v52, 0
    %vm133 = vcmp.eq.s32.totalorder %v52, 1
    %v134 = vstv %s131
    %v135 = vsel %vm133, %v134, 0.0
    %v136 = vstv %s108
    %v137 = vsel %vm132, %v136, %v135
    %138 = vst [vmem:[#allocation8] sm:$0xff] %v137
    // Predicated region
    $region26: #{tpu_custom_call.1} parent=1 // pred_check
      _
    $region27: #{tpu_custom_call.1} parent=1 // pred_check_branch
      %140 = sbr.rel (0) target = $region29
    $region28: #{tpu_custom_call.1} parent=1 // pred_region
      %s142 = ssub.s32 128, 128
      %143 = vsyncadd [#allocation4], %s142
      %s145 = sshll.u32 [#allocation8], 4
      %s146 = int_to_ptr.vmem [resolvable:$true] %s145
      %148 = dma.vmem_to_hbm [thread:$0]  %s146, 128, %s3, [#allocation4]
    $region29: #{tpu_custom_call.1} parent=1 // pred_fallthru
      _
    // Predicated region
    $region30: #{tpu_custom_call.1} parent=1 // pred_check
      _
    $region31: #{tpu_custom_call.1} parent=1 // pred_check_branch
      %150 = sbr.rel (0) target = $region33
    $region32: #{tpu_custom_call.1} parent=1 // pred_region
      %151 = dma.done [#allocation4], 128
    $region33: #{tpu_custom_call.1} parent=1 // pred_fallthru
      _
    %152 = vsyncpa [#allocation3], 1
    %153 = vsyncpa [#allocation6], 1
    %154 = vsyncpa [#allocation4], 1

</llo_original>
